<compile_context>
chip_gen: v7x
topology: tpu7x:2x2x1
jax: 0.10.0
libtpu: 0.0.40
codegen_flags: <defaults>
</compile_context>

<pallas_src>
import jax
import jax.numpy as jnp
from jax.experimental import pallas as pl
from jax.experimental.pallas import tpu as pltpu


def _round_up(a, m):
    return (a + m - 1) // m * m


def _vmem_capacity_bytes():
    """Physical VMEM of the local chip; falls back to 128 MiB (v5e/v6e)."""
    try:
        info = pltpu.get_tpu_info()
        for attr in ("vmem_capacity_bytes", "vmem_bytes", "vmem_size_bytes"):
            v = getattr(info, attr, None)
            if v:
                return int(v)
    except Exception:
        pass
    return 128 * 1024 * 1024


def _pick_row_tile(n, target):
    if n <= 8:
        return n
    # At least two row blocks so v7x's second TensorCore has work; multiple of 8.
    half = _round_up((n + 1) // 2, 8)
    return max(8, min(target, half))


def _pick_f_tile(fp, max_tile):
    # fp is a multiple of 128; pick the largest multiple-of-128 divisor <= max_tile.
    best = 128
    t = 128
    while t <= min(max_tile, fp):
        if fp % t == 0:
            best = t
        t += 128
    return best


def _fits_vmem(tm, tf, d, dout, limit):
    usage = (tm * d * 2 * 2            # x tile, bf16, double-buffered
             + d * (2 * tf) * 2 * 2    # fused W1||W3 tile, bf16, double-buffered
             + (2 * tf) * 4 * 2        # fused b1||b3 tile
             + tf * dout * 2 * 2       # W2 tile, bf16, double-buffered
             + dout * 4 * 2            # b2
             + tm * dout * 4 * 2)      # f32 output block (resident/accumulator)
    return usage <= 0.85 * limit


def ffn_llama_kernel(x_ref, w13_ref, b13_ref, w2_ref, b2_ref, o_ref):
    j = pl.program_id(1)

    @pl.when(j == 0)
    def _():
        o_ref[...] = jnp.zeros_like(o_ref)

    tf = w2_ref.shape[0]                       # static F-tile size

    # One fused up-projection per F step: bf16 MXU inputs, f32 accumulation.
    x = x_ref[...]                                                       # (tm, D) bf16
    h = jnp.dot(x, w13_ref[...], preferred_element_type=jnp.float32)    # (tm, 2*tf)
    h = h + b13_ref[...]
    h1 = h[:, :tf]                                                       # lane-aligned split
    h3 = h[:, tf:]

    # SiLU gate in f32 (sigmoid -> EUP, multiplies -> VPU).
    z = (h1 * jax.nn.sigmoid(h1)) * h3                                   # (tm, tf)

    # Down-projection, accumulated directly into the resident f32 output block.
    o_ref[...] += jnp.dot(z.astype(jnp.bfloat16), w2_ref[...],
                          preferred_element_type=jnp.float32)            # (tm, Dout)

    @pl.when(j == pl.num_programs(1) - 1)
    def _():
        o_ref[...] += b2_ref[...]


def feed_forward_llama(x, w1, b1, w2, b2, w3, b3, *, f_tile_max=256):
    """y = (silu(x @ w1.T + b1) * (x @ w3.T + b3)) @ w2.T + b2  (dropout unused)."""
    orig_shape = x.shape
    D = orig_shape[-1]
    F = w1.shape[0]
    Dout = w2.shape[0]

    # bf16 activations into the kernel (halves x DMA + VMEM; f32 accumulation in-kernel).
    xf = x.reshape(-1, D).astype(jnp.bfloat16)
    N = xf.shape[0]

    # --- generation-aware tiling -------------------------------------------------
    vmem_cap = _vmem_capacity_bytes()
    vmem_limit = max(32 << 20, min(vmem_cap * 3 // 4, 100 << 20))
    row_target = 384 if vmem_cap <= (96 << 20) else 512   # v7x vs v5e/v6e roofline

    Fp = _round_up(F, 128)
    tf = _pick_f_tile(Fp, f_tile_max)
    tm = _pick_row_tile(N, row_target)
    while tm > 64 and not _fits_vmem(tm, tf, D, Dout, vmem_limit):
        tm = max(64, _round_up(tm // 2, 8))
    if not _fits_vmem(tm, tf, D, Dout, vmem_limit):
        tf = 128
    nF = Fp // tf

    # --- weight layout plumbing (pre-transposed, bf16, W1||W3 fused per F-tile) --
    w1t = jnp.asarray(w1.T, dtype=jnp.bfloat16)           # (D, F)
    w3t = jnp.asarray(w3.T, dtype=jnp.bfloat16)           # (D, F)
    w2t = jnp.asarray(w2.T, dtype=jnp.bfloat16)           # (F, Dout)
    b1f = b1.astype(jnp.float32)
    b3f = b3.astype(jnp.float32)
    if Fp != F:
        # Zero-padded F columns contribute exactly 0 through the zero W2 rows.
        w1t = jnp.pad(w1t, ((0, 0), (0, Fp - F)))
        w3t = jnp.pad(w3t, ((0, 0), (0, Fp - F)))
        w2t = jnp.pad(w2t, ((0, Fp - F), (0, 0)))
        b1f = jnp.pad(b1f, (0, Fp - F))
        b3f = jnp.pad(b3f, (0, Fp - F))

    # Interleave so block j of w13 == [W1^T tile j | W3^T tile j] (width 2*tf).
    w13 = jnp.concatenate(
        [w1t.reshape(D, nF, tf), w3t.reshape(D, nF, tf)], axis=2
    ).reshape(D, 2 * Fp)
    b13 = jnp.concatenate(
        [b1f.reshape(nF, tf), b3f.reshape(nF, tf)], axis=1
    ).reshape(1, 2 * Fp)
    b2r = b2.reshape(1, Dout).astype(jnp.float32)

    grid_i = pl.cdiv(N, tm)
    grid = (grid_i, nF)

    flops = 2 * N * D * (2 * Fp) + 2 * N * Fp * Dout
    bytes_accessed = (xf.size * 2
                      + grid_i * (w13.size + w2t.size) * 2   # weights re-streamed per row tile
                      + (b13.size + b2r.size) * 4
                      + N * Dout * 4)

    out = pl.pallas_call(
        ffn_llama_kernel,
        out_shape=jax.ShapeDtypeStruct((N, Dout), jnp.float32),
        grid_spec=pltpu.PrefetchScalarGridSpec(
            num_scalar_prefetch=0,
            grid=grid,
            in_specs=[
                pl.BlockSpec((tm, D), lambda i, j: (i, 0)),        # x row tile (resident over F)
                pl.BlockSpec((D, 2 * tf), lambda i, j: (0, j)),    # [W1^T | W3^T] tile
                pl.BlockSpec((1, 2 * tf), lambda i, j: (0, j)),    # [b1 | b3] tile
                pl.BlockSpec((tf, Dout), lambda i, j: (j, 0)),     # W2^T tile
                pl.BlockSpec((1, Dout), lambda i, j: (0, 0)),      # b2
            ],
            out_specs=pl.BlockSpec((tm, Dout), lambda i, j: (i, 0)),
        ),
        compiler_params=pltpu.CompilerParams(
            dimension_semantics=("parallel", "arbitrary"),
            vmem_limit_bytes=vmem_limit,
        ),
        cost_estimate=pl.CostEstimate(
            flops=flops,
            transcendentals=N * Fp,
            bytes_accessed=bytes_accessed,
        ),
    )(xf, w13, b13, w2t, b2r)

    return out.reshape(*orig_shape[:-1], Dout)


def ref_forward(x, w1, b1, w2, b2, w3, b3):
    """Pure-JAX f32 reference mirroring the PyTorch forward."""
    h = jax.nn.silu(x @ w1.T + b1) * (x @ w3.T + b3)
    return h @ w2.T + b2


if __name__ == "__main__":
    B, T, D = 2, 8, 32          # batch, seq, in_features
    F = 4 * D                   # inter_features
    Dout = D                    # out_features defaults to in_features

    key = jax.random.PRNGKey(0)
    ks = jax.random.split(key, 7)

    x = jax.random.normal(ks[0], (B, T, D), dtype=jnp.float32)
    w1 = 0.05 * jax.random.normal(ks[1], (F, D), dtype=jnp.float32)
    b1 = 0.05 * jax.random.normal(ks[2], (F,), dtype=jnp.float32)
    w2 = 0.05 * jax.random.normal(ks[3], (Dout, F), dtype=jnp.float32)
    b2 = 0.05 * jax.random.normal(ks[4], (Dout,), dtype=jnp.float32)
    w3 = 0.05 * jax.random.normal(ks[5], (F, D), dtype=jnp.float32)
    b3 = 0.05 * jax.random.normal(ks[6], (F,), dtype=jnp.float32)

    out = feed_forward_llama(x, w1, b1, w2, b2, w3, b3)
    out = jax.block_until_ready(out)

    ref = ref_forward(x, w1, b1, w2, b2, w3, b3)
    assert out.shape == (B, T, Dout)
    max_err = float(jnp.max(jnp.abs(out - ref)))
    # Tolerance accounts for bf16 MXU inputs (f32 accumulation).
    assert jnp.allclose(out, ref, atol=2e-2, rtol=2e-2), max_err

    print("KERNEL_OK")
</pallas_src>

<mosaic_0001>
module attributes {stable_mosaic.version = 11 : i64} {
  func.func @ffn_llama_kernel(%arg0: i32, %arg1: i32, %arg2: memref<8x32xbf16, #tpu.memory_space<vmem>>, %arg3: memref<32x256xbf16, #tpu.memory_space<vmem>>, %arg4: memref<1x256xf32, #tpu.memory_space<vmem>>, %arg5: memref<128x32xbf16, #tpu.memory_space<vmem>>, %arg6: memref<1x32xf32, #tpu.memory_space<vmem>>, %arg7: memref<8x32xf32, #tpu.memory_space<vmem>>) attributes {dimension_semantics = [#tpu.dimension_semantics<parallel>, #tpu.dimension_semantics<arbitrary>], iteration_bounds = array<i64: 2, 1>, scalar_prefetch = 0 : i64, scratch_operands = 0 : i64, tpu.core_type = #tpu.core_type<tc>, window_params = [{transform_indices = @transform_0, window_bounds = array<i64: 8, 32>}, {transform_indices = @transform_1, window_bounds = array<i64: 32, 256>}, {transform_indices = @transform_2, window_bounds = array<i64: 1, 256>}, {transform_indices = @transform_3, window_bounds = array<i64: 128, 32>}, {pipeline_mode = #tpu.pipeline_mode<synchronous>, transform_indices = @transform_4, window_bounds = array<i64: 1, 32>}, {transform_indices = @transform_5, window_bounds = array<i64: 8, 32>}]} {
    %c0_i32 = arith.constant 0 : i32
    %0 = arith.cmpi eq, %arg1, %c0_i32 : i32
    %1 = arith.extui %0 : i1 to i32
    %c0_i32_0 = arith.constant 0 : i32
    %2 = arith.cmpi ne, %1, %c0_i32_0 : i32
    scf.if %2 {
      %cst_16 = arith.constant 0.000000e+00 : f32
      %27 = vector.broadcast %cst_16 : f32 to vector<8x32xf32>
      %c0_17 = arith.constant 0 : index
      %c0_18 = arith.constant 0 : index
      %28 = vector.load %arg7[%c0_17, %c0_18] : memref<8x32xf32, #tpu.memory_space<vmem>>, vector<8x32xf32>
      tpu.vector_store %arg7[%c0_17, %c0_18], %27 {strides = array<i32>} : memref<8x32xf32, #tpu.memory_space<vmem>>, vector<8x32xf32>,
    } else {
    }
    %c0 = arith.constant 0 : index
    %c0_1 = arith.constant 0 : index
    %3 = vector.load %arg2[%c0, %c0_1] : memref<8x32xbf16, #tpu.memory_space<vmem>>, vector<8x32xbf16>
    %c0_2 = arith.constant 0 : index
    %c0_3 = arith.constant 0 : index
    %4 = vector.load %arg3[%c0_2, %c0_3] : memref<32x256xbf16, #tpu.memory_space<vmem>>, vector<32x256xbf16>
    %cst = arith.constant dense<0.000000e+00> : vector<8x256xf32>
    %5 = tpu.matmul %3, %4, %cst {dimension_numbers = #tpu.dot_dimension_numbers<[1], [0], [0], [1], [0, 0, 1, 1], [], []>} : vector<8x32xbf16>, vector<32x256xbf16>, vector<8x256xf32> -> vector<8x256xf32>
    %c0_4 = arith.constant 0 : index
    %c0_5 = arith.constant 0 : index
    %6 = vector.load %arg4[%c0_4, %c0_5] : memref<1x256xf32, #tpu.memory_space<vmem>>, vector<1x256xf32>
    %7 = vector.broadcast %6 : vector<1x256xf32> to vector<8x256xf32>
    %8 = arith.addf %5, %7 : vector<8x256xf32>
    %9 = vector.extract_strided_slice %8 {offsets = [0, 0], sizes = [8, 128], strides = [1, 1]} : vector<8x256xf32> to vector<8x128xf32>
    %10 = vector.extract_strided_slice %8 {offsets = [0, 128], sizes = [8, 128], strides = [1, 1]} : vector<8x256xf32> to vector<8x128xf32>
    %11 = arith.negf %9 : vector<8x128xf32>
    %12 = math.exp %11 : vector<8x128xf32>
    %cst_6 = arith.constant 1.000000e+00 : f32
    %13 = vector.broadcast %cst_6 : f32 to vector<8x128xf32>
    %14 = arith.addf %13, %12 : vector<8x128xf32>
    %15 = arith.divf %13, %14 : vector<8x128xf32>
    %16 = arith.mulf %9, %15 : vector<8x128xf32>
    %17 = arith.mulf %16, %10 : vector<8x128xf32>
    %c0_7 = arith.constant 0 : index
    %c0_8 = arith.constant 0 : index
    %18 = vector.load %arg7[%c0_7, %c0_8] : memref<8x32xf32, #tpu.memory_space<vmem>>, vector<8x32xf32>
    %19 = arith.truncf %17 : vector<8x128xf32> to vector<8x128xbf16>
    %c0_9 = arith.constant 0 : index
    %c0_10 = arith.constant 0 : index
    %20 = vector.load %arg5[%c0_9, %c0_10] : memref<128x32xbf16, #tpu.memory_space<vmem>>, vector<128x32xbf16>
    %cst_11 = arith.constant dense<0.000000e+00> : vector<8x32xf32>
    %21 = tpu.matmul %19, %20, %cst_11 {dimension_numbers = #tpu.dot_dimension_numbers<[1], [0], [0], [1], [0, 0, 1, 1], [], []>} : vector<8x128xbf16>, vector<128x32xbf16>, vector<8x32xf32> -> vector<8x32xf32>
    %22 = arith.addf %18, %21 : vector<8x32xf32>
    %c0_12 = arith.constant 0 : index
    %c0_13 = arith.constant 0 : index
    %23 = vector.load %arg7[%c0_12, %c0_13] : memref<8x32xf32, #tpu.memory_space<vmem>>, vector<8x32xf32>
    tpu.vector_store %arg7[%c0_12, %c0_13], %22 {strides = array<i32>} : memref<8x32xf32, #tpu.memory_space<vmem>>, vector<8x32xf32>,
    %c0_i32_14 = arith.constant 0 : i32
    %24 = arith.cmpi eq, %arg1, %c0_i32_14 : i32
    %25 = arith.extui %24 : i1 to i32
    %c0_i32_15 = arith.constant 0 : i32
    %26 = arith.cmpi ne, %25, %c0_i32_15 : i32
    scf.if %26 {
      %c0_16 = arith.constant 0 : index
      %c0_17 = arith.constant 0 : index
      %27 = vector.load %arg7[%c0_16, %c0_17] : memref<8x32xf32, #tpu.memory_space<vmem>>, vector<8x32xf32>
      %c0_18 = arith.constant 0 : index
      %c0_19 = arith.constant 0 : index
      %28 = vector.load %arg6[%c0_18, %c0_19] : memref<1x32xf32, #tpu.memory_space<vmem>>, vector<1x32xf32>
      %29 = vector.broadcast %28 : vector<1x32xf32> to vector<8x32xf32>
      %30 = arith.addf %27, %29 : vector<8x32xf32>
      %c0_20 = arith.constant 0 : index
      %c0_21 = arith.constant 0 : index
      %31 = vector.load %arg7[%c0_20, %c0_21] : memref<8x32xf32, #tpu.memory_space<vmem>>, vector<8x32xf32>
      tpu.vector_store %arg7[%c0_20, %c0_21], %30 {strides = array<i32>} : memref<8x32xf32, #tpu.memory_space<vmem>>, vector<8x32xf32>,
    } else {
    }
    return
  }
  func.func @transform_0(%arg0: i32, %arg1: i32) -> (i32, i32) {
    %c0_i32 = arith.constant 0 : i32
    %c0_i32_0 = arith.constant 0 : i32
    return %arg0, %c0_i32 : i32, i32
  }
  func.func @transform_1(%arg0: i32, %arg1: i32) -> (i32, i32) {
    %c0_i32 = arith.constant 0 : i32
    %c0_i32_0 = arith.constant 0 : i32
    return %c0_i32, %arg1 : i32, i32
  }
  func.func @transform_2(%arg0: i32, %arg1: i32) -> (i32, i32) {
    %c0_i32 = arith.constant 0 : i32
    %c0_i32_0 = arith.constant 0 : i32
    return %c0_i32, %arg1 : i32, i32
  }
  func.func @transform_3(%arg0: i32, %arg1: i32) -> (i32, i32) {
    %c0_i32 = arith.constant 0 : i32
    %c0_i32_0 = arith.constant 0 : i32
    return %arg1, %c0_i32 : i32, i32
  }
  func.func @transform_4(%arg0: i32, %arg1: i32) -> (i32, i32) {
    %c0_i32 = arith.constant 0 : i32
    %c0_i32_0 = arith.constant 0 : i32
    %c0_i32_1 = arith.constant 0 : i32
    return %c0_i32, %c0_i32_0 : i32, i32
  }
  func.func @transform_5(%arg0: i32, %arg1: i32) -> (i32, i32) {
    %c0_i32 = arith.constant 0 : i32
    %c0_i32_0 = arith.constant 0 : i32
    return %arg0, %c0_i32 : i32, i32
  }
}

</mosaic_0001>

<llo_original>
// kernel: tpu_custom_call.1
$region0: #{tpu_custom_call.1}
  #allocation0 [shape = 'u32[]', space=smem, size = 0x4, offset = 0x4, fixed_abs, tag = 'smem constant byte address 0x4 - core index']
  #allocation1 [shape = 'u32[144,128]{1,0:T(1,128)}', space=vmem, size = 0x12000, scoped, tag = 'internal scratch']
  %s0 = inlined_call_operand.hbm [shape: bf16[16,32], index: 0, kind: input, shape index: {}]
  %s1 = inlined_call_operand.hbm [shape: bf16[32,256], index: 1, kind: input, shape index: {}]
  %s2 = inlined_call_operand.hbm [shape: f32[1,256], index: 2, kind: input, shape index: {}]
  %s3 = inlined_call_operand.hbm [shape: bf16[128,32], index: 3, kind: input, shape index: {}]
  %s4 = inlined_call_operand.hbm [shape: f32[1,32], index: 4, kind: input, shape index: {}]
  %s5 = inlined_call_operand.hbm [shape: f32[16,32], index: 5, kind: output, shape index: {}]
  %s6 = sld [smem:[#allocation0]]
  $region81: #{tpu_custom_call.1} parent=0
    _
  %s8 = ssub.s32 1, %s6
  %s9 = scalar_select 0, %s8, %s6
  $region1: #{tpu_custom_call.1} parent=0
    #allocation2 [shape = 'u8[4096]{0}', space=vmem, size = 0x1000, scoped, tag = 'input window, operand 0']
    #allocation3 [shape = 's32[2]{0}', space=sflag, size = 0x8, scoped, tag = 'scoped memory for tpu_custom_call.1']
    #allocation4 [shape = 's32[2]{0}', space=sflag, size = 0x8, scoped, tag = 'scoped memory for tpu_custom_call.1']
    #allocation5 [shape = 'u8[16384]{0}', space=vmem, size = 0x4000, scoped, tag = 'input window, operand 1, single buffered']
    #allocation6 [shape = 's32[1]{0}', space=sflag, size = 0x4, scoped, tag = 'scoped memory for tpu_custom_call.1']
    #allocation7 [shape = 'u8[1024]{0}', space=vmem, size = 0x400, scoped, tag = 'input window, operand 2, single buffered']
    #allocation8 [shape = 'u8[32768]{0}', space=vmem, size = 0x8000, scoped, tag = 'input window, operand 3, single buffered']
    #allocation9 [shape = 's32[1]{0}', space=sflag, size = 0x4, scoped, tag = 'scoped memory for tpu_custom_call.1']
    #allocation10 [shape = 'u8[512]{0}', space=vmem, size = 0x400, scoped, tag = 'input window, operand 4, single buffered']
    #allocation11 [shape = 'u8[8192]{0}', space=vmem, size = 0x2000, scoped, tag = 'output window, operand 0']
    %10 = vsyncpa [#allocation3], 0
    %s11 = scalar_lea.sflag [#allocation3], 1
    %12 = vsyncpa %s11, 0
    %13 = vsyncpa [#allocation6], 0
    %14 = vsyncpa [#allocation9], 0
    %15 = vsyncpa [#allocation4], 0
    %s16 = scalar_lea.sflag [#allocation4], 1
    %17 = vsyncpa %s16, 0
    loop: start=0, step=1, limit=4
    $region2: #{tpu_custom_call.1} parent=1 // loop_pre_header
      _
    $region3: #{tpu_custom_call.1} parent=1 // loop_header
      %s19 = sphi 0, %s23
      %p20 = scmp.ge.s32.totalorder %s19, 4
      %s26 = sphi 0, %s38
      %s27 = sphi 0, %s34
      %s28 = sphi 0, %s26
      %s29 = sphi 0, %s27
      %s30 = sphi 0, %s28
      %s31 = sphi 0, %s29
      %s41 = sphi 0, %s43
      %s44 = sphi 0, %s41
      %s45 = sphi 0, %s44
      %s61 = sphi 0, %s45
      %s67 = sphi 0, %s69
      %s70 = sphi 0, %s67
      %s71 = sphi 0, %s70
      %s87 = sphi 0, %s71
      %s93 = sphi 0, %s95
      %s96 = sphi 0, %s93
      %s97 = sphi 0, %s96
      %s113 = sphi 0, %s97
      %s119 = sphi 0, %s121
      %s122 = sphi 0, %s119
      %s123 = sphi 0, %s122
      %s139 = sphi 0, %s123
      %s143 = sphi 0, %s143
      %s145 = sphi 0, %s143
      %s146 = sphi 0, %s145
      %s160 = sphi 0, %s146
      %s166 = sphi 0, %s168
      %s169 = sphi 0, %s166
      %s170 = sphi 0, %s169
      %s186 = sphi 0, %s170
    $region4: #{tpu_custom_call.1} parent=1 // loop_header_branch
      %22 = sbr.rel (%p20) target = $region8
    $region5: #{tpu_custom_call.1} parent=1 // loop_body
      %s24 = ssub.s32 %s19, 1
      %s25 = ssub.s32 %s19, 2
      %s32 = sadd.s32 1, %s27
      %p33 = scmp.ge.s32.totalorder %s32, 1
      %s34 = scalar_select %p33, 0, %s32
      %s35 = sadd.s32 1, %s26
      %s36 = scalar_select %p33, %s35, %s26
      %p37 = scmp.ge.s32.totalorder %s36, 2
      %s38 = scalar_select %p37, 0, %s36
      %s39 = ssub.s32 %s26, %s38
      %p40 = scmp.eq.s32.totalorder %s39, 0
      %s42 = sadd.s32 %s41, 1
      %s43 = scalar_select %p40, %s41, %s42
      %p46 = pneg %p40
      %p47 = scmp.eq.s32.totalorder %s19, 1
      %p48 = por %p46, %p47
      %p49 = scmp.ne.s32.totalorder %s41, %s44
      %p50 = scmp.eq.s32.totalorder %s19, 0
      %p51 = por %p49, %p50
      %p52 = scmp.ne.s32.totalorder %s41, %s44
      %p53 = scmp.eq.s32.totalorder %s24, 1
      %p54 = por %p52, %p53
      %p55 = scmp.ne.s32.totalorder %s44, %s45
      %p56 = scmp.eq.s32.totalorder %s24, 0
      %p57 = por %p55, %p56
      %p58 = scmp.ne.s32.totalorder %s44, %s45
      %p59 = scmp.eq.s32.totalorder %s25, 1
      %p60 = por %p58, %p59
      %p62 = scmp.ne.s32.totalorder %s45, %s61
      %p63 = scmp.eq.s32.totalorder %s25, 0
      %p64 = por %p62, %p63
      %s65 = ssub.s32 %s27, %s34
      %p66 = scmp.eq.s32.totalorder %s65, 0
      %s68 = sadd.s32 %s67, 1
      %s69 = scalar_select %p66, %s67, %s68
      %p72 = pneg %p66
      %p73 = scmp.eq.s32.totalorder %s19, 1
      %p74 = por %p72, %p73
      %p75 = scmp.ne.s32.totalorder %s67, %s70
      %p76 = scmp.eq.s32.totalorder %s19, 0
      %p77 = por %p75, %p76
      %p78 = scmp.ne.s32.totalorder %s67, %s70
      %p79 = scmp.eq.s32.totalorder %s24, 1
      %p80 = por %p78, %p79
      %p81 = scmp.ne.s32.totalorder %s70, %s71
      %p82 = scmp.eq.s32.totalorder %s24, 0
      %p83 = por %p81, %p82
      %p84 = scmp.ne.s32.totalorder %s70, %s71
      %p85 = scmp.eq.s32.totalorder %s25, 1
      %p86 = por %p84, %p85
      %p88 = scmp.ne.s32.totalorder %s71, %s87
      %p89 = scmp.eq.s32.totalorder %s25, 0
      %p90 = por %p88, %p89
      %s91 = ssub.s32 %s27, %s34
      %p92 = scmp.eq.s32.totalorder %s91, 0
      %s94 = sadd.s32 %s93, 1
      %s95 = scalar_select %p92, %s93, %s94
      %p98 = pneg %p92
      %p99 = scmp.eq.s32.totalorder %s19, 1
      %p100 = por %p98, %p99
      %p101 = scmp.ne.s32.totalorder %s93, %s96
      %p102 = scmp.eq.s32.totalorder %s19, 0
      %p103 = por %p101, %p102
      %p104 = scmp.ne.s32.totalorder %s93, %s96
      %p105 = scmp.eq.s32.totalorder %s24, 1
      %p106 = por %p104, %p105
      %p107 = scmp.ne.s32.totalorder %s96, %s97
      %p108 = scmp.eq.s32.totalorder %s24, 0
      %p109 = por %p107, %p108
      %p110 = scmp.ne.s32.totalorder %s96, %s97
      %p111 = scmp.eq.s32.totalorder %s25, 1
      %p112 = por %p110, %p111
      %p114 = scmp.ne.s32.totalorder %s97, %s113
      %p115 = scmp.eq.s32.totalorder %s25, 0
      %p116 = por %p114, %p115
      %s117 = ssub.s32 %s27, %s34
      %p118 = scmp.eq.s32.totalorder %s117, 0
      %s120 = sadd.s32 %s119, 1
      %s121 = scalar_select %p118, %s119, %s120
      %p124 = pneg %p118
      %p125 = scmp.eq.s32.totalorder %s19, 1
      %p126 = por %p124, %p125
      %p127 = scmp.ne.s32.totalorder %s119, %s122
      %p128 = scmp.eq.s32.totalorder %s19, 0
      %p129 = por %p127, %p128
      %p130 = scmp.ne.s32.totalorder %s119, %s122
      %p131 = scmp.eq.s32.totalorder %s24, 1
      %p132 = por %p130, %p131
      %p133 = scmp.ne.s32.totalorder %s122, %s123
      %p134 = scmp.eq.s32.totalorder %s24, 0
      %p135 = por %p133, %p134
      %p136 = scmp.ne.s32.totalorder %s122, %s123
      %p137 = scmp.eq.s32.totalorder %s25, 1
      %p138 = por %p136, %p137
      %p140 = scmp.ne.s32.totalorder %s123, %s139
      %p141 = scmp.eq.s32.totalorder %s25, 0
      %p142 = por %p140, %p141
      %s144 = sadd.s32 %s143, 1
      %p147 = scmp.eq.s32.totalorder %s19, 1
      %p148 = scmp.ne.s32.totalorder %s143, %s145
      %p149 = scmp.eq.s32.totalorder %s19, 0
      %p150 = por %p148, %p149
      %p151 = scmp.ne.s32.totalorder %s143, %s145
      %p152 = scmp.eq.s32.totalorder %s24, 1
      %p153 = por %p151, %p152
      %p154 = scmp.ne.s32.totalorder %s145, %s146
      %p155 = scmp.eq.s32.totalorder %s24, 0
      %p156 = por %p154, %p155
      %p157 = scmp.ne.s32.totalorder %s145, %s146
      %p158 = scmp.eq.s32.totalorder %s25, 1
      %p159 = por %p157, %p158
      %p161 = scmp.ne.s32.totalorder %s146, %s160
      %p162 = scmp.eq.s32.totalorder %s25, 0
      %p163 = por %p161, %p162
      %s164 = ssub.s32 %s26, %s38
      %p165 = scmp.eq.s32.totalorder %s164, 0
      %s167 = sadd.s32 %s166, 1
      %s168 = scalar_select %p165, %s166, %s167
      %p171 = pneg %p165
      %p172 = scmp.eq.s32.totalorder %s19, 1
      %p173 = por %p171, %p172
      %p174 = scmp.ne.s32.totalorder %s166, %s169
      %p175 = scmp.eq.s32.totalorder %s19, 0
      %p176 = por %p174, %p175
      %p177 = scmp.ne.s32.totalorder %s166, %s169
      %p178 = scmp.eq.s32.totalorder %s24, 1
      %p179 = por %p177, %p178
      %p180 = scmp.ne.s32.totalorder %s169, %s170
      %p181 = scmp.eq.s32.totalorder %s24, 0
      %p182 = por %p180, %p181
      %p183 = scmp.ne.s32.totalorder %s169, %s170
      %p184 = scmp.eq.s32.totalorder %s25, 1
      %p185 = por %p183, %p184
      %p187 = scmp.ne.s32.totalorder %s170, %s186
      %p188 = scmp.eq.s32.totalorder %s25, 0
      %p189 = por %p187, %p188
      %p190 = scmp.le.s32.totalorder 1, %s19
      %p191 = scmp.lt.s32.totalorder %s19, 3
      %p192 = pnand %p190, %p191
      %p193 = pneg %p192
      // Predicated region
      $region9: #{tpu_custom_call.1} parent=5 // pred_check
        _
      $region10: #{tpu_custom_call.1} parent=5 // pred_check_branch
        %195 = sbr.rel (%p192) target = $region12
      $region11: #{tpu_custom_call.1} parent=5 // pred_region
        %s196 = ssub.s32 %s19, 1
        // Predicated region
        $region13: #{tpu_custom_call.1} parent=11 // pred_check
          %p197 = pneg %p83
        $region14: #{tpu_custom_call.1} parent=11 // pred_check_branch
          %199 = sbr.rel (%p197) target = $region16
        $region15: #{tpu_custom_call.1} parent=11 // pred_region
          %s200 = smul.u32 2, %s29
          %s202 = ssub.s32 512, 512
          %203 = vsyncadd [#allocation6], %s202
          %s204 = smul.addr %s200, 64
          %s205 = scalar_lea.hbm %s1, %s204
          %s206 = sshll.u32 [#allocation5], 4
          %s207 = int_to_ptr.vmem [resolvable:$true] %s206
          %212 = dma.hbm_to_vmem [thread:$0]  %s205, 512, %s207, [#allocation6], 128, 128, 8
        $region16: #{tpu_custom_call.1} parent=11 // pred_fallthru
          _
        // Predicated region
        $region17: #{tpu_custom_call.1} parent=11 // pred_check
          %p213 = pneg %p109
        $region18: #{tpu_custom_call.1} parent=11 // pred_check_branch
          %215 = sbr.rel (%p213) target = $region20
        $region19: #{tpu_custom_call.1} parent=11 // pred_region
          %s216 = smul.u32 2, %s29
          %s218 = ssub.s32 32, 32
          %219 = vsyncadd [#allocation6], %s218
          %s220 = smul.addr %s216, 16
          %s221 = scalar_lea.hbm %s2, %s220
          %s223 = sshll.u32 [#allocation7], 4
          %s224 = int_to_ptr.vmem [resolvable:$true] %s223
          %226 = dma.hbm_to_vmem [thread:$0]  %s221, 32, %s224, [#allocation6]
        $region20: #{tpu_custom_call.1} parent=11 // pred_fallthru
          _
        // Predicated region
        $region21: #{tpu_custom_call.1} parent=11 // pred_check
          %p227 = pneg %p135
        $region22: #{tpu_custom_call.1} parent=11 // pred_check_branch
          %229 = sbr.rel (%p227) target = $region24
        $region23: #{tpu_custom_call.1} parent=11 // pred_region
          %s230 = smul.u32 16, %s29
          %s232 = ssub.s32 1024, 1024
          %233 = vsyncadd [#allocation9], %s232
          %s234 = smul.addr %s230, 64
          %s235 = scalar_lea.hbm %s3, %s234
          %s236 = sshll.u32 [#allocation8], 4
          %s237 = int_to_ptr.vmem [resolvable:$true] %s236
          %242 = dma.hbm_to_vmem [thread:$0]  %s235, 1024, %s237, [#allocation9], 64, 64, 4
        $region24: #{tpu_custom_call.1} parent=11 // pred_fallthru
          _
        // Predicated region
        $region25: #{tpu_custom_call.1} parent=11 // pred_check
          %p243 = pneg %p156
        $region26: #{tpu_custom_call.1} parent=11 // pred_check_branch
          %245 = sbr.rel (%p243) target = $region28
        $region27: #{tpu_custom_call.1} parent=11 // pred_region
          %s247 = ssub.s32 16, 16
          %248 = vsyncadd [#allocation9], %s247
          %s250 = sshll.u32 [#allocation10], 4
          %s251 = int_to_ptr.vmem [resolvable:$true] %s250
          %253 = dma.hbm_to_vmem [thread:$0]  %s4, 16, %s251, [#allocation9]
        $region28: #{tpu_custom_call.1} parent=11 // pred_fallthru
          _
      $region12: #{tpu_custom_call.1} parent=5 // pred_fallthru
        _
      %p254 = scmp.lt.s32.totalorder %s19, 2
      // Predicated region
      $region29: #{tpu_custom_call.1} parent=5 // pred_check
        %p255 = pneg %p254
      $region30: #{tpu_custom_call.1} parent=5 // pred_check_branch
        %257 = sbr.rel (%p255) target = $region32
      $region31: #{tpu_custom_call.1} parent=5 // pred_region
        // Predicated region
        $region33: #{tpu_custom_call.1} parent=31 // pred_check
          %p258 = pneg %p51
        $region34: #{tpu_custom_call.1} parent=31 // pred_check_branch
          %260 = sbr.rel (%p258) target = $region36
        $region35: #{tpu_custom_call.1} parent=31 // pred_region
          %s261 = sand.u32 %s41, 1
          %s262 = scalar_lea.sflag [#allocation3], %s261
          %s263 = sand.u32 %s41, 1
          %s264 = smul.addr %s263, 4
          %s265 = scalar_lea.vmem [#allocation2], %s264
          %s267 = ssub.s32 64, 64
          %268 = vsyncadd %s262, %s267
          %s269 = smul.addr %s26, 64
          %s270 = scalar_lea.hbm %s0, %s269
          %s272 = sshll.u32 %s265, 4
          %s273 = int_to_ptr.vmem [resolvable:$true] %s272
          %275 = dma.hbm_to_vmem [thread:$0]  %s270, 64, %s273, %s262
        $region36: #{tpu_custom_call.1} parent=31 // pred_fallthru
          _
      $region32: #{tpu_custom_call.1} parent=5 // pred_fallthru
        _
      %p276 = scmp.le.s32.totalorder 1, %s19
      %p277 = scmp.lt.s32.totalorder %s19, 3
      %p278 = pnand %p276, %p277
      %p279 = pneg %p278
      // Predicated region
      $region37: #{tpu_custom_call.1} parent=5 // pred_check
        _
      $region38: #{tpu_custom_call.1} parent=5 // pred_check_branch
        %281 = sbr.rel (%p278) target = $region40
      $region39: #{tpu_custom_call.1} parent=5 // pred_region
        %s282 = ssub.s32 %s19, 1
        %s283 = sand.u32 %s44, 1
        %s284 = scalar_lea.sflag [#allocation3], %s283
        %s285 = sand.u32 %s44, 1
        %s286 = smul.addr %s285, 4
        %s287 = scalar_lea.vmem [#allocation2], %s286
        // Predicated region
        $region41: #{tpu_custom_call.1} parent=39 // pred_check
          %p288 = pneg %p57
        $region42: #{tpu_custom_call.1} parent=39 // pred_check_branch
          %290 = sbr.rel (%p288) target = $region44
        $region43: #{tpu_custom_call.1} parent=39 // pred_region
          %291 = dma.done %s284, 64
        $region44: #{tpu_custom_call.1} parent=39 // pred_fallthru
          _
        // Predicated region
        $region45: #{tpu_custom_call.1} parent=39 // pred_check
          %p292 = pneg %p83
        $region46: #{tpu_custom_call.1} parent=39 // pred_check_branch
          %294 = sbr.rel (%p292) target = $region48
        $region47: #{tpu_custom_call.1} parent=39 // pred_region
          %295 = dma.done [#allocation6], 512
        $region48: #{tpu_custom_call.1} parent=39 // pred_fallthru
          _
        // Predicated region
        $region49: #{tpu_custom_call.1} parent=39 // pred_check
          %p296 = pneg %p109
        $region50: #{tpu_custom_call.1} parent=39 // pred_check_branch
          %298 = sbr.rel (%p296) target = $region52
        $region51: #{tpu_custom_call.1} parent=39 // pred_region
          %299 = dma.done [#allocation6], 32
        $region52: #{tpu_custom_call.1} parent=39 // pred_fallthru
          _
        // Predicated region
        $region53: #{tpu_custom_call.1} parent=39 // pred_check
          %p300 = pneg %p135
        $region54: #{tpu_custom_call.1} parent=39 // pred_check_branch
          %302 = sbr.rel (%p300) target = $region56
        $region55: #{tpu_custom_call.1} parent=39 // pred_region
          %303 = dma.done [#allocation9], 1024
        $region56: #{tpu_custom_call.1} parent=39 // pred_fallthru
          _
        // Predicated region
        $region57: #{tpu_custom_call.1} parent=39 // pred_check
          %p304 = pneg %p156
        $region58: #{tpu_custom_call.1} parent=39 // pred_check_branch
          %306 = sbr.rel (%p304) target = $region60
        $region59: #{tpu_custom_call.1} parent=39 // pred_region
          %307 = dma.done [#allocation9], 16
        $region60: #{tpu_custom_call.1} parent=39 // pred_fallthru
          _
        %s308 = sand.u32 %s44, 1
        %s309 = scalar_lea.sflag [#allocation3], %s308
        %s310 = sand.u32 %s44, 1
        %s311 = smul.addr %s310, 4
        %s312 = scalar_lea.vmem [#allocation2], %s311
        %p313 = pneg %p57
        %p314 = pneg %p54
        %p315 = pneg %p83
        %p316 = pneg %p80
        %p317 = pneg %p109
        %p318 = pneg %p106
        %p319 = pneg %p135
        %p320 = pneg %p132
        %p321 = pneg %p156
        %p322 = pneg %p153
        %p323 = pneg %p182
        %p324 = pneg %p179
        %s325 = sand.u32 %s169, 1
        %s326 = scalar_lea.sflag [#allocation4], %s325
        %s327 = sand.u32 %s169, 1
        %s328 = smul.addr %s327, 8
        %s329 = scalar_lea.vmem [#allocation11], %s328
        %s330 = smul.u32 2, %s29
        %s331 = smul.u32 2, %s29
        %s332 = smul.u32 16, %s29
        %p334 = scmp.eq.s32.totalorder %s29, 0
        // Predicated region
        $region61: #{tpu_custom_call.1} parent=39 // pred_check
          %p335 = pneg %p334
        $region62: #{tpu_custom_call.1} parent=39 // pred_check_branch
          %337 = sbr.rel (%p335) target = $region64
        $region63: #{tpu_custom_call.1} parent=39 // pred_region
          %vm338 = vcmask 261120
          %339 = vst.msk [vmem:[%s329] sm:$0xff] %vm338, 0.0
        $region64: #{tpu_custom_call.1} parent=39 // pred_fallthru
          _
        %v340 = vld [vmem:[%s287] sm:$0xf]
        %v341 = vld [vmem:[#allocation5] sm:$0xff]
        %v342 = vld [vmem:[#allocation5 + $0x8] sm:$0xff]
        %v343 = vld [vmem:[#allocation5 + $0x10] sm:$0xff]
        %v344 = vld [vmem:[#allocation5 + $0x18] sm:$0xff]
        %v345 = vld [vmem:[#allocation7] sm:$0x3]
        %v347 = vlaneseq
        %v348 = vshrl.u32 %v347, 7
        %v349 = vsub.s32 0, %v348
        %v350 = vrot.slane %v345, %v349
        %v351 = vlaneseq
        %v352 = vshrl.u32 %v351, 7
        %v353 = vsub.s32 1, %v352
        %v354 = vrot.slane %v345, %v353
        %v361 = vunpack.c.l.b16 %v341
        %v362 = vunpack.c.h.b16 %v341
        %v363 = vunpack.c.l.b16 %v342
        %v364 = vunpack.c.h.b16 %v342
        %v365 = vunpack.c.l.b16 %v343
        %v366 = vunpack.c.h.b16 %v343
        %v367 = vunpack.c.l.b16 %v344
        %v368 = vunpack.c.h.b16 %v344
        %v369 = vpack.c.b16 %v363, %v361
        %v370 = vpack.c.b16 %v364, %v362
        %v371 = vpack.c.b16 %v367, %v365
        %v372 = vpack.c.b16 %v368, %v366
        %vm377 = vcmask 261120
        %v379 = vsel %vm377, %v340, 0
        %381 = vmatprep.subr.bf16.mxu0 %v370
        %382 = vmatpush1.bf16.msra.mxu0 %v369
        %383 = vmatprep.subr.bf16.mxu0 %v372
        %384 = vmatpush1.bf16.msra.mxu0 %v371
        %385 = vmatprep.subr.bf16.mxu0 0
        %386 = vmatpush1.bf16.msra.mxu0 0
        %387 = vmatprep.subr.bf16.mxu0 0
        %388 = vmatpush1.bf16.msra.mxu0 0
        %389 = vmatprep.subr.bf16.mxu0 0
        %390 = vmatpush1.bf16.msra.mxu0 0
        %391 = vmatprep.subr.bf16.mxu0 0
        %392 = vmatpush1.bf16.msra.mxu0 0
        %393 = vmatprep.subr.bf16.mxu0 0
        %394 = vmatpush1.bf16.msra.mxu0 0
        %395 = vmatprep.subr.bf16.mxu0 0
        %396 = vmatpush1.bf16.msra.mxu0 0
        %397 = vmatprep.subr.bf16.mxu0 0
        %398 = vmatpush1.bf16.msra.mxu0 0
        %399 = vmatprep.subr.bf16.mxu0 0
        %400 = vmatpush1.bf16.msra.mxu0 0
        %401 = vmatprep.subr.bf16.mxu0 0
        %402 = vmatpush1.bf16.msra.mxu0 0
        %403 = vmatprep.subr.bf16.mxu0 0
        %404 = vmatpush1.bf16.msra.mxu0 0
        %405 = vmatprep.subr.bf16.mxu0 0
        %406 = vmatpush1.bf16.msra.mxu0 0
        %407 = vmatprep.subr.bf16.mxu0 0
        %408 = vmatpush1.bf16.msra.mxu0 0
        %409 = vmatprep.subr.bf16.mxu0 0
        %410 = vmatpush1.bf16.msra.mxu0 0
        %411 = vmatprep.subr.bf16.mxu0 0
        %412 = vmatpush1.bf16.msra.mxu0 0
        %413 = vmatprep.mubr.bf16.mxu0 0
        %414 = vmatmul.mubr.bf16.gmra.mrb[0].mxu0 %v379
        %v415 = vpop.f32.mrb[0].mxu0
        %v416 = vadd.f32 %v350, %v415
        %v417 = vpop.f32.mrb[0].mxu0
        %v418 = vadd.f32 %v354, %v417
        %v419 = vpop.f32.mrb[0].mxu0
        %v420 = vpop.f32.mrb[0].mxu0
        %421 = vdwg.mxu0
        %v422 = vxor.u32 %v416, 2147483648
        %v423 = vmul.f32 %v422, 1.442695
        %v424 = vpow.pop %v423
        %v425 = vadd.f32 %v424, 1.0
        %v426 = vrcp.pop %v425
        %v427 = vmul.f32 1.0, %v426
        %v428 = vmul.f32 %v416, %v427
        %v429 = vmul.f32 %v428, %v418
        %v430 = vld [vmem:[%s329] sm:$0xff]
        %v431 = vpack.c.bf16 %v429, %v429
        %v432 = vld [vmem:[#allocation8] sm:$0xf]
        %v433 = vld [vmem:[#allocation8 + $0x4] sm:$0xf]
        %v434 = vld [vmem:[#allocation8 + $0x8] sm:$0xf]
        %v435 = vld [vmem:[#allocation8 + $0xc] sm:$0xf]
        %v436 = vld [vmem:[#allocation8 + $0x10] sm:$0xf]
        %v437 = vld [vmem:[#allocation8 + $0x14] sm:$0xf]
        %v438 = vld [vmem:[#allocation8 + $0x18] sm:$0xf]
        %v439 = vld [vmem:[#allocation8 + $0x1c] sm:$0xf]
        %v440 = vld [vmem:[#allocation8 + $0x20] sm:$0xf]
        %v441 = vld [vmem:[#allocation8 + $0x24] sm:$0xf]
        %v442 = vld [vmem:[#allocation8 + $0x28] sm:$0xf]
        %v443 = vld [vmem:[#allocation8 + $0x2c] sm:$0xf]
        %v444 = vld [vmem:[#allocation8 + $0x30] sm:$0xf]
        %v445 = vld [vmem:[#allocation8 + $0x34] sm:$0xf]
        %v446 = vld [vmem:[#allocation8 + $0x38] sm:$0xf]
        %v447 = vld [vmem:[#allocation8 + $0x3c] sm:$0xf]
        %v464 = vunpack.c.l.b16 %v432
        %v465 = vunpack.c.l.b16 %v433
        %v466 = vunpack.c.l.b16 %v434
        %v467 = vunpack.c.l.b16 %v435
        %v468 = vunpack.c.l.b16 %v436
        %v469 = vunpack.c.l.b16 %v437
        %v470 = vunpack.c.l.b16 %v438
        %v471 = vunpack.c.l.b16 %v439
        %v472 = vunpack.c.l.b16 %v440
        %v473 = vunpack.c.l.b16 %v441
        %v474 = vunpack.c.l.b16 %v442
        %v475 = vunpack.c.l.b16 %v443
        %v476 = vunpack.c.l.b16 %v444
        %v477 = vunpack.c.l.b16 %v445
        %v478 = vunpack.c.l.b16 %v446
        %v479 = vunpack.c.l.b16 %v447
        %v480 = vpack.c.b16 %v465, %v464
        %v481 = vpack.c.b16 %v467, %v466
        %v482 = vpack.c.b16 %v469, %v468
        %v483 = vpack.c.b16 %v471, %v470
        %v484 = vpack.c.b16 %v473, %v472
        %v485 = vpack.c.b16 %v475, %v474
        %v486 = vpack.c.b16 %v477, %v476
        %v487 = vpack.c.b16 %v479, %v478
        %496 = vmatprep.subr.bf16.mxu0 0
        %497 = vmatpush1.bf16.msra.mxu0 %v480
        %498 = vmatprep.subr.bf16.mxu0 0
        %499 = vmatpush1.bf16.msra.mxu0 %v481
        %500 = vmatprep.subr.bf16.mxu0 0
        %501 = vmatpush1.bf16.msra.mxu0 %v482
        %502 = vmatprep.subr.bf16.mxu0 0
        %503 = vmatpush1.bf16.msra.mxu0 %v483
        %504 = vmatprep.subr.bf16.mxu0 0
        %505 = vmatpush1.bf16.msra.mxu0 %v484
        %506 = vmatprep.subr.bf16.mxu0 0
        %507 = vmatpush1.bf16.msra.mxu0 %v485
        %508 = vmatprep.subr.bf16.mxu0 0
        %509 = vmatpush1.bf16.msra.mxu0 %v486
        %510 = vmatprep.subr.bf16.mxu0 0
        %511 = vmatpush1.bf16.msra.mxu0 %v487
        %512 = vmatprep.subr.bf16.mxu0 0
        %513 = vmatpush1.bf16.msra.mxu0 0
        %514 = vmatprep.subr.bf16.mxu0 0
        %515 = vmatpush1.bf16.msra.mxu0 0
        %516 = vmatprep.subr.bf16.mxu0 0
        %517 = vmatpush1.bf16.msra.mxu0 0
        %518 = vmatprep.subr.bf16.mxu0 0
        %519 = vmatpush1.bf16.msra.mxu0 0
        %520 = vmatprep.subr.bf16.mxu0 0
        %521 = vmatpush1.bf16.msra.mxu0 0
        %522 = vmatprep.subr.bf16.mxu0 0
        %523 = vmatpush1.bf16.msra.mxu0 0
        %524 = vmatprep.subr.bf16.mxu0 0
        %525 = vmatpush1.bf16.msra.mxu0 0
        %526 = vmatprep.subr.bf16.mxu0 0
        %527 = vmatpush1.bf16.msra.mxu0 0
        %528 = vmatprep.mubr.bf16.mxu0 0
        %529 = vmatmul.mubr.bf16.gmra.mrb[0].mxu0 %v431
        %v530 = vpop.f32.mrb[0].mxu0
        %v531 = vadd.f32 0.0, %v530
        %v532 = vpop.f32.mrb[0].mxu0
        %v533 = vpop.f32.mrb[0].mxu0
        %v534 = vpop.f32.mrb[0].mxu0
        %535 = vdwg.mxu0
        %v536 = vadd.f32 %v430, %v531
        %537 = vst.msk [vmem:[%s329] sm:$0xff] %vm377, %v536
        // Predicated region
        $region65: #{tpu_custom_call.1} parent=39 // pred_check
          %p538 = pneg %p334
        $region66: #{tpu_custom_call.1} parent=39 // pred_check_branch
          %540 = sbr.rel (%p538) target = $region68
        $region67: #{tpu_custom_call.1} parent=39 // pred_region
          %v541 = vld [vmem:[%s329] sm:$0xff]
          %v542 = vld [vmem:[#allocation10] sm:$0x1]
          %v544 = vlaneseq
          %v545 = vshrl.u32 %v544, 7
          %v546 = vsub.s32 0, %v545
          %v547 = vrot.slane %v542, %v546
          %v549 = vadd.f32 %v541, %v547
          %550 = vst.msk [vmem:[%s329] sm:$0xff] %vm377, %v549
        $region68: #{tpu_custom_call.1} parent=39 // pred_fallthru
          _
        %s551 = sand.u32 %s169, 1
        %s552 = scalar_lea.sflag [#allocation4], %s551
        %s553 = sand.u32 %s169, 1
        %s554 = smul.addr %s553, 8
        %s555 = scalar_lea.vmem [#allocation11], %s554
        // Predicated region
        $region69: #{tpu_custom_call.1} parent=39 // pred_check
          %p556 = pneg %p179
        $region70: #{tpu_custom_call.1} parent=39 // pred_check_branch
          %558 = sbr.rel (%p556) target = $region72
        $region71: #{tpu_custom_call.1} parent=39 // pred_region
          %s560 = ssub.s32 128, 128
          %561 = vsyncadd %s552, %s560
          %s562 = smul.addr %s28, 128
          %s563 = scalar_lea.hbm %s5, %s562
          %s565 = sshll.u32 %s555, 4
          %s566 = int_to_ptr.vmem [resolvable:$true] %s565
          %568 = dma.vmem_to_hbm [thread:$0]  %s566, 128, %s563, %s552
        $region72: #{tpu_custom_call.1} parent=39 // pred_fallthru
          _
      $region40: #{tpu_custom_call.1} parent=5 // pred_fallthru
        _
      %p569 = scmp.le.s32.totalorder 2, %s19
      // Predicated region
      $region73: #{tpu_custom_call.1} parent=5 // pred_check
        %p570 = pneg %p569
      $region74: #{tpu_custom_call.1} parent=5 // pred_check_branch
        %572 = sbr.rel (%p570) target = $region76
      $region75: #{tpu_custom_call.1} parent=5 // pred_region
        %s573 = ssub.s32 %s19, 2
        // Predicated region
        $region77: #{tpu_custom_call.1} parent=75 // pred_check
          %p574 = pneg %p185
        $region78: #{tpu_custom_call.1} parent=75 // pred_check_branch
          %576 = sbr.rel (%p574) target = $region80
        $region79: #{tpu_custom_call.1} parent=75 // pred_region
          %s577 = sand.u32 %s170, 1
          %s578 = scalar_lea.sflag [#allocation4], %s577
          %s579 = sand.u32 %s170, 1
          %s580 = smul.addr %s579, 8
          %s581 = scalar_lea.vmem [#allocation11], %s580
          %582 = dma.done %s578, 128
        $region80: #{tpu_custom_call.1} parent=75 // pred_fallthru
          _
      $region76: #{tpu_custom_call.1} parent=5 // pred_fallthru
        _
    $region6: #{tpu_custom_call.1} parent=1 // loop_footer
      %s23 = sadd.s32 1, %s19
    $region7: #{tpu_custom_call.1} parent=1 // loop_footer_branch
      %18 = sbr.rel target = $region3
    $region8: #{tpu_custom_call.1} parent=1 // loop_exit
      _
    %583 = vsyncpa [#allocation3], 1
    %s584 = scalar_lea.sflag [#allocation3], 1
    %585 = vsyncpa %s584, 1
    %586 = vsyncpa [#allocation6], 1
    %587 = vsyncpa [#allocation9], 1
    %588 = vsyncpa [#allocation4], 1
    %s589 = scalar_lea.sflag [#allocation4], 1
    %590 = vsyncpa %s589, 1

</llo_original>
